<compile_context>
chip_gen: v7x
topology: tpu7x:2x2x1
jax: 0.10.0
libtpu: 0.0.40
codegen_flags: <defaults>
</compile_context>

<pallas_src>
import functools

import jax
import jax.numpy as jnp
from jax.experimental import pallas as pl
from jax.experimental.pallas import tpu as pltpu


def _round_up(x, m):
    return (x + m - 1) // m * m


def _fused_mlp_kernel(x_ref, *refs):
    """refs = (w1, b1, w2, b2, ..., wL, bL, out_ref).

    Computes the whole MLP for one (tm, D0p) batch tile; intermediate
    activations stay on-chip.
    """
    out_ref = refs[-1]
    wb_refs = refs[:-1]

    h = x_ref[...]
    for i in range(0, len(wb_refs), 2):
        w = wb_refs[i][...]          # (Kp, Np) padded weight, full layer
        b = wb_refs[i + 1][...]      # (1, Np) padded bias
        h = jnp.dot(h, w, preferred_element_type=jnp.float32) + b
        h = jnp.maximum(h, 0.0)
    out_ref[...] = h.astype(out_ref.dtype)


@functools.partial(jax.jit, static_argnames=("out_dim", "tm"))
def fused_mlp_forward(x, weights, biases, *, out_dim, tm=128):
    """y = relu(...relu(relu(x@w1+b1)@w2+b2)...), all layers in one kernel.

    x: (M, K) float32.
    weights[l]: (K_l_padded, N_l_padded), zero-padded, pre-transposed.
    biases[l]:  (1, N_l_padded), zero-padded.
    Zero padding is exact: padded K rows/cols contribute 0 to every matmul,
    and padded batch rows / output cols are sliced off at the end.
    """
    M, K = x.shape
    K0p = weights[0].shape[0]
    NLp = weights[-1].shape[1]

    Mp = _round_up(max(M, 1), tm)
    xp = jnp.zeros((Mp, K0p), x.dtype).at[:M, :K].set(x)

    grid = (Mp // tm,)

    in_specs = [pl.BlockSpec((tm, K0p), lambda i: (i, 0))]   # x batch tile
    for w, b in zip(weights, biases):
        Kp, Np = w.shape
        # Whole (tiny, padded) weight / bias as a single resident block.
        in_specs.append(pl.BlockSpec((Kp, Np), lambda i: (0, 0)))
        in_specs.append(pl.BlockSpec((1, Np), lambda i: (0, 0)))
    out_specs = pl.BlockSpec((tm, NLp), lambda i: (i, 0))

    # Advisory cost for XLA's scheduler.
    flops = 0
    bytes_accessed = xp.size * 4 + Mp * NLp * 4
    for w in weights:
        flops += 2 * Mp * w.shape[0] * w.shape[1]
        bytes_accessed += w.size * 4 + w.shape[1] * 4

    flat_params = [a for wb in zip(weights, biases) for a in wb]

    out = pl.pallas_call(
        _fused_mlp_kernel,
        out_shape=jax.ShapeDtypeStruct((Mp, NLp), x.dtype),
        grid_spec=pltpu.PrefetchScalarGridSpec(
            num_scalar_prefetch=0,
            grid=grid,
            in_specs=in_specs,
            out_specs=out_specs,
        ),
        compiler_params=pltpu.CompilerParams(
            # Batch axis is independent work -> shards across TCs on v7x.
            dimension_semantics=("parallel",),
        ),
        cost_estimate=pl.CostEstimate(
            flops=flops, transcendentals=0, bytes_accessed=bytes_accessed
        ),
    )(xp, *flat_params)

    return out[:M, :out_dim]


class MLPEncoderPallas:
    """JAX/Pallas equivalent of models.AE.MLPEncoder (Linear+ReLU chain)."""

    def __init__(self, input_dim, hidden_dims, key):
        self.input_dim = input_dim
        self.hidden_dims = list(hidden_dims)
        self.n_encoder_output = hidden_dims[-1]

        # Unpadded params (stored (in, out)) — used for the reference check.
        self.params = []
        in_dim = input_dim
        for dim in hidden_dims:
            key, kw, kb = jax.random.split(key, 3)
            # PyTorch default Linear init: U(-1/sqrt(in), 1/sqrt(in))
            bound = 1.0 / jnp.sqrt(in_dim)
            w_pt = jax.random.uniform(
                kw, (dim, in_dim), jnp.float32, -bound, bound
            )  # PyTorch layout (out, in)
            b = jax.random.uniform(kb, (dim,), jnp.float32, -bound, bound)
            self.params.append((w_pt.T, b))  # (in, out)
            in_dim = dim

        # Pre-pad once at init: every feature dim rounded up to a multiple of
        # 128 (lane alignment), so no padding of static params happens per
        # forward call.  For these sizes everything fits trivially in VMEM.
        dims = [input_dim] + self.hidden_dims
        self._padded_dims = [_round_up(d, 128) for d in dims]
        pw, pb = [], []
        for l, (w, b) in enumerate(self.params):
            Kp, Np = self._padded_dims[l], self._padded_dims[l + 1]
            wp = jnp.zeros((Kp, Np), w.dtype).at[: w.shape[0], : w.shape[1]].set(w)
            bp = jnp.zeros((1, Np), b.dtype).at[0, : b.shape[0]].set(b)
            pw.append(wp)
            pb.append(bp)
        self.padded_weights = tuple(pw)
        self.padded_biases = tuple(pb)

    def __call__(self, x):
        # x: (batch, input_dim) -> (batch, hidden_dims[-1])
        return fused_mlp_forward(
            x,
            self.padded_weights,
            self.padded_biases,
            out_dim=self.n_encoder_output,
            tm=128,
        )


if __name__ == "__main__":
    key = jax.random.PRNGKey(0)
    k_in, k_model = jax.random.split(key)

    batch = 2
    input_dim = 16
    hidden_dims = [32, 32, 8]

    x = jax.random.normal(k_in, (batch, input_dim), jnp.float32)
    model = MLPEncoderPallas(input_dim, hidden_dims, k_model)

    y = model(x)
    y = jax.block_until_ready(y)

    # Reference check in plain JAX (Linear + ReLU chain, unpadded params).
    ref = x
    for w, b in model.params:
        ref = jnp.maximum(ref @ w + b, 0.0)

    assert y.shape == (batch, hidden_dims[-1]), y.shape
    assert jnp.allclose(y, ref, atol=1e-5, rtol=1e-5), "mismatch vs reference"

    print("KERNEL_OK")
</pallas_src>

<mosaic_0001>
module attributes {stable_mosaic.version = 11 : i64} {
  func.func @_fused_mlp_kernel(%arg0: i32, %arg1: memref<128x128xf32, #tpu.memory_space<vmem>>, %arg2: memref<128x128xf32, #tpu.memory_space<vmem>>, %arg3: memref<1x128xf32, #tpu.memory_space<vmem>>, %arg4: memref<128x128xf32, #tpu.memory_space<vmem>>, %arg5: memref<1x128xf32, #tpu.memory_space<vmem>>, %arg6: memref<128x128xf32, #tpu.memory_space<vmem>>, %arg7: memref<1x128xf32, #tpu.memory_space<vmem>>, %arg8: memref<128x128xf32, #tpu.memory_space<vmem>>) attributes {dimension_semantics = [#tpu.dimension_semantics<parallel>], iteration_bounds = array<i64: 1>, scalar_prefetch = 0 : i64, scratch_operands = 0 : i64, tpu.core_type = #tpu.core_type<tc>, window_params = [{transform_indices = @transform_0, window_bounds = array<i64: 128, 128>}, {pipeline_mode = #tpu.pipeline_mode<synchronous>, transform_indices = @transform_1, window_bounds = array<i64: 128, 128>}, {pipeline_mode = #tpu.pipeline_mode<synchronous>, transform_indices = @transform_2, window_bounds = array<i64: 1, 128>}, {pipeline_mode = #tpu.pipeline_mode<synchronous>, transform_indices = @transform_3, window_bounds = array<i64: 128, 128>}, {pipeline_mode = #tpu.pipeline_mode<synchronous>, transform_indices = @transform_4, window_bounds = array<i64: 1, 128>}, {pipeline_mode = #tpu.pipeline_mode<synchronous>, transform_indices = @transform_5, window_bounds = array<i64: 128, 128>}, {pipeline_mode = #tpu.pipeline_mode<synchronous>, transform_indices = @transform_6, window_bounds = array<i64: 1, 128>}, {transform_indices = @transform_7, window_bounds = array<i64: 128, 128>}]} {
    %c0 = arith.constant 0 : index
    %c0_0 = arith.constant 0 : index
    %0 = vector.load %arg1[%c0, %c0_0] : memref<128x128xf32, #tpu.memory_space<vmem>>, vector<128x128xf32>
    %c0_1 = arith.constant 0 : index
    %c0_2 = arith.constant 0 : index
    %1 = vector.load %arg2[%c0_1, %c0_2] : memref<128x128xf32, #tpu.memory_space<vmem>>, vector<128x128xf32>
    %c0_3 = arith.constant 0 : index
    %c0_4 = arith.constant 0 : index
    %2 = vector.load %arg3[%c0_3, %c0_4] : memref<1x128xf32, #tpu.memory_space<vmem>>, vector<1x128xf32>
    %cst = arith.constant dense<0.000000e+00> : vector<128x128xf32>
    %3 = tpu.matmul %0, %1, %cst {dimension_numbers = #tpu.dot_dimension_numbers<[1], [0], [0], [1], [0, 0, 1, 1], [], []>} : vector<128x128xf32>, vector<128x128xf32>, vector<128x128xf32> -> vector<128x128xf32>
    %4 = vector.broadcast %2 : vector<1x128xf32> to vector<128x128xf32>
    %5 = arith.addf %3, %4 : vector<128x128xf32>
    %cst_5 = arith.constant 0.000000e+00 : f32
    %6 = vector.broadcast %cst_5 : f32 to vector<128x128xf32>
    %7 = arith.maximumf %5, %6 : vector<128x128xf32>
    %c0_6 = arith.constant 0 : index
    %c0_7 = arith.constant 0 : index
    %8 = vector.load %arg4[%c0_6, %c0_7] : memref<128x128xf32, #tpu.memory_space<vmem>>, vector<128x128xf32>
    %c0_8 = arith.constant 0 : index
    %c0_9 = arith.constant 0 : index
    %9 = vector.load %arg5[%c0_8, %c0_9] : memref<1x128xf32, #tpu.memory_space<vmem>>, vector<1x128xf32>
    %cst_10 = arith.constant dense<0.000000e+00> : vector<128x128xf32>
    %10 = tpu.matmul %7, %8, %cst_10 {dimension_numbers = #tpu.dot_dimension_numbers<[1], [0], [0], [1], [0, 0, 1, 1], [], []>} : vector<128x128xf32>, vector<128x128xf32>, vector<128x128xf32> -> vector<128x128xf32>
    %11 = vector.broadcast %9 : vector<1x128xf32> to vector<128x128xf32>
    %12 = arith.addf %10, %11 : vector<128x128xf32>
    %cst_11 = arith.constant 0.000000e+00 : f32
    %13 = vector.broadcast %cst_11 : f32 to vector<128x128xf32>
    %14 = arith.maximumf %12, %13 : vector<128x128xf32>
    %c0_12 = arith.constant 0 : index
    %c0_13 = arith.constant 0 : index
    %15 = vector.load %arg6[%c0_12, %c0_13] : memref<128x128xf32, #tpu.memory_space<vmem>>, vector<128x128xf32>
    %c0_14 = arith.constant 0 : index
    %c0_15 = arith.constant 0 : index
    %16 = vector.load %arg7[%c0_14, %c0_15] : memref<1x128xf32, #tpu.memory_space<vmem>>, vector<1x128xf32>
    %cst_16 = arith.constant dense<0.000000e+00> : vector<128x128xf32>
    %17 = tpu.matmul %14, %15, %cst_16 {dimension_numbers = #tpu.dot_dimension_numbers<[1], [0], [0], [1], [0, 0, 1, 1], [], []>} : vector<128x128xf32>, vector<128x128xf32>, vector<128x128xf32> -> vector<128x128xf32>
    %18 = vector.broadcast %16 : vector<1x128xf32> to vector<128x128xf32>
    %19 = arith.addf %17, %18 : vector<128x128xf32>
    %cst_17 = arith.constant 0.000000e+00 : f32
    %20 = vector.broadcast %cst_17 : f32 to vector<128x128xf32>
    %21 = arith.maximumf %19, %20 : vector<128x128xf32>
    %c0_18 = arith.constant 0 : index
    %c0_19 = arith.constant 0 : index
    %22 = vector.load %arg8[%c0_18, %c0_19] : memref<128x128xf32, #tpu.memory_space<vmem>>, vector<128x128xf32>
    tpu.vector_store %arg8[%c0_18, %c0_19], %21 {strides = array<i32>} : memref<128x128xf32, #tpu.memory_space<vmem>>, vector<128x128xf32>,
    return
  }
  func.func @transform_0(%arg0: i32) -> (i32, i32) {
    %c0_i32 = arith.constant 0 : i32
    %c0_i32_0 = arith.constant 0 : i32
    return %arg0, %c0_i32 : i32, i32
  }
  func.func @transform_1(%arg0: i32) -> (i32, i32) {
    %c0_i32 = arith.constant 0 : i32
    %c0_i32_0 = arith.constant 0 : i32
    %c0_i32_1 = arith.constant 0 : i32
    return %c0_i32, %c0_i32_0 : i32, i32
  }
  func.func @transform_2(%arg0: i32) -> (i32, i32) {
    %c0_i32 = arith.constant 0 : i32
    %c0_i32_0 = arith.constant 0 : i32
    %c0_i32_1 = arith.constant 0 : i32
    return %c0_i32, %c0_i32_0 : i32, i32
  }
  func.func @transform_3(%arg0: i32) -> (i32, i32) {
    %c0_i32 = arith.constant 0 : i32
    %c0_i32_0 = arith.constant 0 : i32
    %c0_i32_1 = arith.constant 0 : i32
    return %c0_i32, %c0_i32_0 : i32, i32
  }
  func.func @transform_4(%arg0: i32) -> (i32, i32) {
    %c0_i32 = arith.constant 0 : i32
    %c0_i32_0 = arith.constant 0 : i32
    %c0_i32_1 = arith.constant 0 : i32
    return %c0_i32, %c0_i32_0 : i32, i32
  }
  func.func @transform_5(%arg0: i32) -> (i32, i32) {
    %c0_i32 = arith.constant 0 : i32
    %c0_i32_0 = arith.constant 0 : i32
    %c0_i32_1 = arith.constant 0 : i32
    return %c0_i32, %c0_i32_0 : i32, i32
  }
  func.func @transform_6(%arg0: i32) -> (i32, i32) {
    %c0_i32 = arith.constant 0 : i32
    %c0_i32_0 = arith.constant 0 : i32
    %c0_i32_1 = arith.constant 0 : i32
    return %c0_i32, %c0_i32_0 : i32, i32
  }
  func.func @transform_7(%arg0: i32) -> (i32, i32) {
    %c0_i32 = arith.constant 0 : i32
    %c0_i32_0 = arith.constant 0 : i32
    return %arg0, %c0_i32 : i32, i32
  }
}

</mosaic_0001>

<llo_original>
// kernel: fused_mlp_forward.1
$region0: #{fused_mlp_forward.1}
  #allocation0 [shape = 'u32[]', space=smem, size = 0x4, offset = 0x4, fixed_abs, tag = 'smem constant byte address 0x4 - core index']
  #allocation1 [shape = 'u32[144,128]{1,0:T(1,128)}', space=vmem, size = 0x12000, scoped, tag = 'internal scratch']
  %s0 = inlined_call_operand.vmem [shape: f32[128,128], index: 0, kind: input, shape index: {}]
  %s1 = inlined_call_operand.vmem [shape: f32[128,128], index: 1, kind: input, shape index: {}]
  %s2 = inlined_call_operand.vmem [shape: f32[1,128], index: 2, kind: input, shape index: {}]
  %s3 = inlined_call_operand.hbm [shape: f32[128,128], index: 3, kind: input, shape index: {}]
  %s4 = inlined_call_operand.vmem [shape: f32[1,128], index: 4, kind: input, shape index: {}]
  %s5 = inlined_call_operand.hbm [shape: f32[128,128], index: 5, kind: input, shape index: {}]
  %s6 = inlined_call_operand.vmem [shape: f32[1,128], index: 6, kind: input, shape index: {}]
  %s7 = inlined_call_operand.vmem [shape: f32[128,128], index: 7, kind: output, shape index: {}]
  %s8 = sld [smem:[#allocation0]]
  $region46: #{fused_mlp_forward.1} parent=0
    _
  %s10 = ssub.s32 1, %s8
  %s11 = scalar_select 0, %s10, %s8
  $region1: #{fused_mlp_forward.1} parent=0
    #allocation2 [shape = 'u8[65536]{0}', space=vmem, size = 0x10000, scoped, tag = 'input window, operand 3, single buffered']
    #allocation3 [shape = 's32[1]{0}', space=sflag, size = 0x4, scoped, tag = 'scoped memory for fused_mlp_forward.1']
    #allocation4 [shape = 'u8[65536]{0}', space=vmem, size = 0x10000, scoped, tag = 'input window, operand 5, single buffered']
    #allocation5 [shape = 's32[1]{0}', space=sflag, size = 0x4, scoped, tag = 'scoped memory for fused_mlp_forward.1']
    %12 = vsyncpa [#allocation3], 0
    %13 = vsyncpa [#allocation5], 0
    // Predicated region
    $region2: #{fused_mlp_forward.1} parent=1 // pred_check
      _
    $region3: #{fused_mlp_forward.1} parent=1 // pred_check_branch
      %15 = sbr.rel (0) target = $region5
    $region4: #{fused_mlp_forward.1} parent=1 // pred_region
      _
    $region5: #{fused_mlp_forward.1} parent=1 // pred_fallthru
      _
    // Predicated region
    $region6: #{fused_mlp_forward.1} parent=1 // pred_check
      _
    $region7: #{fused_mlp_forward.1} parent=1 // pred_check_branch
      %17 = sbr.rel (0) target = $region9
    $region8: #{fused_mlp_forward.1} parent=1 // pred_region
      _
    $region9: #{fused_mlp_forward.1} parent=1 // pred_fallthru
      _
    // Predicated region
    $region10: #{fused_mlp_forward.1} parent=1 // pred_check
      _
    $region11: #{fused_mlp_forward.1} parent=1 // pred_check_branch
      %19 = sbr.rel (0) target = $region13
    $region12: #{fused_mlp_forward.1} parent=1 // pred_region
      _
    $region13: #{fused_mlp_forward.1} parent=1 // pred_fallthru
      _
    // Predicated region
    $region14: #{fused_mlp_forward.1} parent=1 // pred_check
      _
    $region15: #{fused_mlp_forward.1} parent=1 // pred_check_branch
      %21 = sbr.rel (0) target = $region17
    $region16: #{fused_mlp_forward.1} parent=1 // pred_region
      %s23 = ssub.s32 2048, 2048
      %24 = vsyncadd [#allocation3], %s23
      %s25 = sshll.u32 [#allocation2], 4
      %s26 = int_to_ptr.vmem [resolvable:$true] %s25
      %31 = dma.hbm_to_vmem [thread:$0]  %s3, 2048, %s26, [#allocation3], 128, 128, 8
    $region17: #{fused_mlp_forward.1} parent=1 // pred_fallthru
      _
    // Predicated region
    $region18: #{fused_mlp_forward.1} parent=1 // pred_check
      _
    $region19: #{fused_mlp_forward.1} parent=1 // pred_check_branch
      %33 = sbr.rel (0) target = $region21
    $region20: #{fused_mlp_forward.1} parent=1 // pred_region
      _
    $region21: #{fused_mlp_forward.1} parent=1 // pred_fallthru
      _
    // Predicated region
    $region22: #{fused_mlp_forward.1} parent=1 // pred_check
      _
    $region23: #{fused_mlp_forward.1} parent=1 // pred_check_branch
      %35 = sbr.rel (0) target = $region25
    $region24: #{fused_mlp_forward.1} parent=1 // pred_region
      %s37 = ssub.s32 2048, 2048
      %38 = vsyncadd [#allocation5], %s37
      %s39 = sshll.u32 [#allocation4], 4
      %s40 = int_to_ptr.vmem [resolvable:$true] %s39
      %45 = dma.hbm_to_vmem [thread:$0]  %s5, 2048, %s40, [#allocation5], 128, 128, 8
    $region25: #{fused_mlp_forward.1} parent=1 // pred_fallthru
      _
    // Predicated region
    $region26: #{fused_mlp_forward.1} parent=1 // pred_check
      _
    $region27: #{fused_mlp_forward.1} parent=1 // pred_check_branch
      %47 = sbr.rel (0) target = $region29
    $region28: #{fused_mlp_forward.1} parent=1 // pred_region
      _
    $region29: #{fused_mlp_forward.1} parent=1 // pred_fallthru
      _
    // Predicated region
    $region30: #{fused_mlp_forward.1} parent=1 // pred_check
      _
    $region31: #{fused_mlp_forward.1} parent=1 // pred_check_branch
      %49 = sbr.rel (0) target = $region33
    $region32: #{fused_mlp_forward.1} parent=1 // pred_region
      %50 = dma.done [#allocation3], 2048
    $region33: #{fused_mlp_forward.1} parent=1 // pred_fallthru
      _
    // Predicated region
    $region34: #{fused_mlp_forward.1} parent=1 // pred_check
      _
    $region35: #{fused_mlp_forward.1} parent=1 // pred_check_branch
      %52 = sbr.rel (0) target = $region37
    $region36: #{fused_mlp_forward.1} parent=1 // pred_region
      %53 = dma.done [#allocation5], 2048
    $region37: #{fused_mlp_forward.1} parent=1 // pred_fallthru
      _
    %v54 = vld [vmem:[%s0] sm:$0xff]
    %v55 = vld [vmem:[%s0 + $0x8] sm:$0xff]
    %v56 = vld [vmem:[%s0 + $0x10] sm:$0xff]
    %v57 = vld [vmem:[%s0 + $0x18] sm:$0xff]
    %v58 = vld [vmem:[%s0 + $0x20] sm:$0xff]
    %v59 = vld [vmem:[%s0 + $0x28] sm:$0xff]
    %v60 = vld [vmem:[%s0 + $0x30] sm:$0xff]
    %v61 = vld [vmem:[%s0 + $0x38] sm:$0xff]
    %v62 = vld [vmem:[%s0 + $0x40] sm:$0xff]
    %v63 = vld [vmem:[%s0 + $0x48] sm:$0xff]
    %v64 = vld [vmem:[%s0 + $0x50] sm:$0xff]
    %v65 = vld [vmem:[%s0 + $0x58] sm:$0xff]
    %v66 = vld [vmem:[%s0 + $0x60] sm:$0xff]
    %v67 = vld [vmem:[%s0 + $0x68] sm:$0xff]
    %v68 = vld [vmem:[%s0 + $0x70] sm:$0xff]
    %v69 = vld [vmem:[%s0 + $0x78] sm:$0xff]
    %v70 = vld [vmem:[%s1] sm:$0xff]
    %v71 = vld [vmem:[%s1 + $0x8] sm:$0xff]
    %v72 = vld [vmem:[%s1 + $0x10] sm:$0xff]
    %v73 = vld [vmem:[%s1 + $0x18] sm:$0xff]
    %v74 = vld [vmem:[%s1 + $0x20] sm:$0xff]
    %v75 = vld [vmem:[%s1 + $0x28] sm:$0xff]
    %v76 = vld [vmem:[%s1 + $0x30] sm:$0xff]
    %v77 = vld [vmem:[%s1 + $0x38] sm:$0xff]
    %v78 = vld [vmem:[%s1 + $0x40] sm:$0xff]
    %v79 = vld [vmem:[%s1 + $0x48] sm:$0xff]
    %v80 = vld [vmem:[%s1 + $0x50] sm:$0xff]
    %v81 = vld [vmem:[%s1 + $0x58] sm:$0xff]
    %v82 = vld [vmem:[%s1 + $0x60] sm:$0xff]
    %v83 = vld [vmem:[%s1 + $0x68] sm:$0xff]
    %v84 = vld [vmem:[%s1 + $0x70] sm:$0xff]
    %v85 = vld [vmem:[%s1 + $0x78] sm:$0xff]
    %v86 = vld [vmem:[%s2] sm:$0x1]
    %v88 = vlaneseq
    %v89 = vshrl.u32 %v88, 7
    %v90 = vsub.s32 0, %v89
    %v91 = vrot.slane %v86, %v90
    %93 = vmatprep.subr.mxu0 0.0
    %94 = vmatpush1.msra.mxu0 %v70
    %95 = vmatprep.subr.mxu0 0.0
    %96 = vmatpush1.msra.mxu0 %v71
    %97 = vmatprep.subr.mxu0 0.0
    %98 = vmatpush1.msra.mxu0 %v72
    %99 = vmatprep.subr.mxu0 0.0
    %100 = vmatpush1.msra.mxu0 %v73
    %101 = vmatprep.subr.mxu0 0.0
    %102 = vmatpush1.msra.mxu0 %v74
    %103 = vmatprep.subr.mxu0 0.0
    %104 = vmatpush1.msra.mxu0 %v75
    %105 = vmatprep.subr.mxu0 0.0
    %106 = vmatpush1.msra.mxu0 %v76
    %107 = vmatprep.subr.mxu0 0.0
    %108 = vmatpush1.msra.mxu0 %v77
    %109 = vmatprep.subr.mxu0 0.0
    %110 = vmatpush1.msra.mxu0 %v78
    %111 = vmatprep.subr.mxu0 0.0
    %112 = vmatpush1.msra.mxu0 %v79
    %113 = vmatprep.subr.mxu0 0.0
    %114 = vmatpush1.msra.mxu0 %v80
    %115 = vmatprep.subr.mxu0 0.0
    %116 = vmatpush1.msra.mxu0 %v81
    %117 = vmatprep.subr.mxu0 0.0
    %118 = vmatpush1.msra.mxu0 %v82
    %119 = vmatprep.subr.mxu0 0.0
    %120 = vmatpush1.msra.mxu0 %v83
    %121 = vmatprep.subr.mxu0 0.0
    %122 = vmatpush1.msra.mxu0 %v84
    %123 = vmatprep.subr.mxu0 0.0
    %124 = vmatpush1.msra.mxu0 %v85
    %125 = vmatprep.subr.mxu0 0.0
    %126 = vmatpush1.msra.mxu0 0.0
    %127 = vmatprep.subr.mxu0 0.0
    %128 = vmatpush1.msra.mxu0 0.0
    %129 = vmatprep.subr.mxu0 0.0
    %130 = vmatpush1.msra.mxu0 0.0
    %131 = vmatprep.subr.mxu0 0.0
    %132 = vmatpush1.msra.mxu0 0.0
    %133 = vmatprep.subr.mxu0 0.0
    %134 = vmatpush1.msra.mxu0 0.0
    %135 = vmatprep.subr.mxu0 0.0
    %136 = vmatpush1.msra.mxu0 0.0
    %137 = vmatprep.subr.mxu0 0.0
    %138 = vmatpush1.msra.mxu0 0.0
    %139 = vmatprep.subr.mxu0 0.0
    %140 = vmatpush1.msra.mxu0 0.0
    %141 = vmatprep.subr.mxu0 0.0
    %142 = vmatpush1.msra.mxu0 0.0
    %143 = vmatprep.subr.mxu0 0.0
    %144 = vmatpush1.msra.mxu0 0.0
    %145 = vmatprep.subr.mxu0 0.0
    %146 = vmatpush1.msra.mxu0 0.0
    %147 = vmatprep.subr.mxu0 0.0
    %148 = vmatpush1.msra.mxu0 0.0
    %149 = vmatprep.subr.mxu0 0.0
    %150 = vmatpush1.msra.mxu0 0.0
    %151 = vmatprep.subr.mxu0 0.0
    %152 = vmatpush1.msra.mxu0 0.0
    %153 = vmatprep.subr.mxu0 0.0
    %154 = vmatpush1.msra.mxu0 0.0
    %155 = vmatprep.subr.mxu0 0.0
    %156 = vmatpush1.msra.mxu0 0.0
    %157 = vmatprep.mubr.f32.mxu0 0.0
    %158 = vmatmul.mubr.f32.gmra.mrb[0].mxu0 %v54
    %v159 = vpop.f32.mrb[0].mxu0
    %v160 = vadd.f32 %v91, %v159
    %v161 = vpop.f32.mrb[0].mxu0
    %162 = vmatprep.mubr.f32.mxu0 0.0
    %163 = vmatmul.mubr.f32.gmra.mrb[0].mxu0 %v55
    %v164 = vpop.f32.mrb[0].mxu0
    %v165 = vadd.f32 %v91, %v164
    %v166 = vpop.f32.mrb[0].mxu0
    %167 = vmatprep.mubr.f32.mxu0 0.0
    %168 = vmatmul.mubr.f32.gmra.mrb[0].mxu0 %v56
    %v169 = vpop.f32.mrb[0].mxu0
    %v170 = vadd.f32 %v91, %v169
    %v171 = vpop.f32.mrb[0].mxu0
    %172 = vmatprep.mubr.f32.mxu0 0.0
    %173 = vmatmul.mubr.f32.gmra.mrb[0].mxu0 %v57
    %v174 = vpop.f32.mrb[0].mxu0
    %v175 = vadd.f32 %v91, %v174
    %v176 = vpop.f32.mrb[0].mxu0
    %177 = vmatprep.mubr.f32.mxu0 0.0
    %178 = vmatmul.mubr.f32.gmra.mrb[0].mxu0 %v58
    %v179 = vpop.f32.mrb[0].mxu0
    %v180 = vadd.f32 %v91, %v179
    %v181 = vpop.f32.mrb[0].mxu0
    %182 = vmatprep.mubr.f32.mxu0 0.0
    %183 = vmatmul.mubr.f32.gmra.mrb[0].mxu0 %v59
    %v184 = vpop.f32.mrb[0].mxu0
    %v185 = vadd.f32 %v91, %v184
    %v186 = vpop.f32.mrb[0].mxu0
    %187 = vmatprep.mubr.f32.mxu0 0.0
    %188 = vmatmul.mubr.f32.gmra.mrb[0].mxu0 %v60
    %v189 = vpop.f32.mrb[0].mxu0
    %v190 = vadd.f32 %v91, %v189
    %v191 = vpop.f32.mrb[0].mxu0
    %192 = vmatprep.mubr.f32.mxu0 0.0
    %193 = vmatmul.mubr.f32.gmra.mrb[0].mxu0 %v61
    %v194 = vpop.f32.mrb[0].mxu0
    %v195 = vadd.f32 %v91, %v194
    %v196 = vpop.f32.mrb[0].mxu0
    %197 = vmatprep.mubr.f32.mxu0 0.0
    %198 = vmatmul.mubr.f32.gmra.mrb[0].mxu0 %v62
    %v199 = vpop.f32.mrb[0].mxu0
    %v200 = vadd.f32 %v91, %v199
    %v201 = vpop.f32.mrb[0].mxu0
    %202 = vmatprep.mubr.f32.mxu0 0.0
    %203 = vmatmul.mubr.f32.gmra.mrb[0].mxu0 %v63
    %v204 = vpop.f32.mrb[0].mxu0
    %v205 = vadd.f32 %v91, %v204
    %v206 = vpop.f32.mrb[0].mxu0
    %207 = vmatprep.mubr.f32.mxu0 0.0
    %208 = vmatmul.mubr.f32.gmra.mrb[0].mxu0 %v64
    %v209 = vpop.f32.mrb[0].mxu0
    %v210 = vadd.f32 %v91, %v209
    %v211 = vpop.f32.mrb[0].mxu0
    %212 = vmatprep.mubr.f32.mxu0 0.0
    %213 = vmatmul.mubr.f32.gmra.mrb[0].mxu0 %v65
    %v214 = vpop.f32.mrb[0].mxu0
    %v215 = vadd.f32 %v91, %v214
    %v216 = vpop.f32.mrb[0].mxu0
    %217 = vmatprep.mubr.f32.mxu0 0.0
    %218 = vmatmul.mubr.f32.gmra.mrb[0].mxu0 %v66
    %v219 = vpop.f32.mrb[0].mxu0
    %v220 = vadd.f32 %v91, %v219
    %v221 = vpop.f32.mrb[0].mxu0
    %222 = vmatprep.mubr.f32.mxu0 0.0
    %223 = vmatmul.mubr.f32.gmra.mrb[0].mxu0 %v67
    %v224 = vpop.f32.mrb[0].mxu0
    %v225 = vadd.f32 %v91, %v224
    %v226 = vpop.f32.mrb[0].mxu0
    %227 = vmatprep.mubr.f32.mxu0 0.0
    %228 = vmatmul.mubr.f32.gmra.mrb[0].mxu0 %v68
    %v229 = vpop.f32.mrb[0].mxu0
    %v230 = vadd.f32 %v91, %v229
    %v231 = vpop.f32.mrb[0].mxu0
    %232 = vmatprep.mubr.f32.mxu0 0.0
    %233 = vmatmul.mubr.f32.gmra.mrb[0].mxu0 %v69
    %v234 = vpop.f32.mrb[0].mxu0
    %v235 = vadd.f32 %v91, %v234
    %v236 = vpop.f32.mrb[0].mxu0
    %237 = vdwg.mxu0
    %v238 = vmax.f32 %v160, 0.0
    %v239 = vmax.f32 %v165, 0.0
    %v240 = vmax.f32 %v170, 0.0
    %v241 = vmax.f32 %v175, 0.0
    %v242 = vmax.f32 %v180, 0.0
    %v243 = vmax.f32 %v185, 0.0
    %v244 = vmax.f32 %v190, 0.0
    %v245 = vmax.f32 %v195, 0.0
    %v246 = vmax.f32 %v200, 0.0
    %v247 = vmax.f32 %v205, 0.0
    %v248 = vmax.f32 %v210, 0.0
    %v249 = vmax.f32 %v215, 0.0
    %v250 = vmax.f32 %v220, 0.0
    %v251 = vmax.f32 %v225, 0.0
    %v252 = vmax.f32 %v230, 0.0
    %v253 = vmax.f32 %v235, 0.0
    %v254 = vld [vmem:[#allocation2] sm:$0xff]
    %v255 = vld [vmem:[#allocation2 + $0x8] sm:$0xff]
    %v256 = vld [vmem:[#allocation2 + $0x10] sm:$0xff]
    %v257 = vld [vmem:[#allocation2 + $0x18] sm:$0xff]
    %v258 = vld [vmem:[#allocation2 + $0x20] sm:$0xff]
    %v259 = vld [vmem:[#allocation2 + $0x28] sm:$0xff]
    %v260 = vld [vmem:[#allocation2 + $0x30] sm:$0xff]
    %v261 = vld [vmem:[#allocation2 + $0x38] sm:$0xff]
    %v262 = vld [vmem:[#allocation2 + $0x40] sm:$0xff]
    %v263 = vld [vmem:[#allocation2 + $0x48] sm:$0xff]
    %v264 = vld [vmem:[#allocation2 + $0x50] sm:$0xff]
    %v265 = vld [vmem:[#allocation2 + $0x58] sm:$0xff]
    %v266 = vld [vmem:[#allocation2 + $0x60] sm:$0xff]
    %v267 = vld [vmem:[#allocation2 + $0x68] sm:$0xff]
    %v268 = vld [vmem:[#allocation2 + $0x70] sm:$0xff]
    %v269 = vld [vmem:[#allocation2 + $0x78] sm:$0xff]
    %v270 = vld [vmem:[%s4] sm:$0x1]
    %v272 = vlaneseq
    %v273 = vshrl.u32 %v272, 7
    %v274 = vsub.s32 0, %v273
    %v275 = vrot.slane %v270, %v274
    %277 = vmatprep.subr.mxu0 0.0
    %278 = vmatpush1.msra.mxu0 %v254
    %279 = vmatprep.subr.mxu0 0.0
    %280 = vmatpush1.msra.mxu0 %v255
    %281 = vmatprep.subr.mxu0 0.0
    %282 = vmatpush1.msra.mxu0 %v256
    %283 = vmatprep.subr.mxu0 0.0
    %284 = vmatpush1.msra.mxu0 %v257
    %285 = vmatprep.subr.mxu0 0.0
    %286 = vmatpush1.msra.mxu0 %v258
    %287 = vmatprep.subr.mxu0 0.0
    %288 = vmatpush1.msra.mxu0 %v259
    %289 = vmatprep.subr.mxu0 0.0
    %290 = vmatpush1.msra.mxu0 %v260
    %291 = vmatprep.subr.mxu0 0.0
    %292 = vmatpush1.msra.mxu0 %v261
    %293 = vmatprep.subr.mxu0 0.0
    %294 = vmatpush1.msra.mxu0 %v262
    %295 = vmatprep.subr.mxu0 0.0
    %296 = vmatpush1.msra.mxu0 %v263
    %297 = vmatprep.subr.mxu0 0.0
    %298 = vmatpush1.msra.mxu0 %v264
    %299 = vmatprep.subr.mxu0 0.0
    %300 = vmatpush1.msra.mxu0 %v265
    %301 = vmatprep.subr.mxu0 0.0
    %302 = vmatpush1.msra.mxu0 %v266
    %303 = vmatprep.subr.mxu0 0.0
    %304 = vmatpush1.msra.mxu0 %v267
    %305 = vmatprep.subr.mxu0 0.0
    %306 = vmatpush1.msra.mxu0 %v268
    %307 = vmatprep.subr.mxu0 0.0
    %308 = vmatpush1.msra.mxu0 %v269
    %309 = vmatprep.subr.mxu0 0.0
    %310 = vmatpush1.msra.mxu0 0.0
    %311 = vmatprep.subr.mxu0 0.0
    %312 = vmatpush1.msra.mxu0 0.0
    %313 = vmatprep.subr.mxu0 0.0
    %314 = vmatpush1.msra.mxu0 0.0
    %315 = vmatprep.subr.mxu0 0.0
    %316 = vmatpush1.msra.mxu0 0.0
    %317 = vmatprep.subr.mxu0 0.0
    %318 = vmatpush1.msra.mxu0 0.0
    %319 = vmatprep.subr.mxu0 0.0
    %320 = vmatpush1.msra.mxu0 0.0
    %321 = vmatprep.subr.mxu0 0.0
    %322 = vmatpush1.msra.mxu0 0.0
    %323 = vmatprep.subr.mxu0 0.0
    %324 = vmatpush1.msra.mxu0 0.0
    %325 = vmatprep.subr.mxu0 0.0
    %326 = vmatpush1.msra.mxu0 0.0
    %327 = vmatprep.subr.mxu0 0.0
    %328 = vmatpush1.msra.mxu0 0.0
    %329 = vmatprep.subr.mxu0 0.0
    %330 = vmatpush1.msra.mxu0 0.0
    %331 = vmatprep.subr.mxu0 0.0
    %332 = vmatpush1.msra.mxu0 0.0
    %333 = vmatprep.subr.mxu0 0.0
    %334 = vmatpush1.msra.mxu0 0.0
    %335 = vmatprep.subr.mxu0 0.0
    %336 = vmatpush1.msra.mxu0 0.0
    %337 = vmatprep.subr.mxu0 0.0
    %338 = vmatpush1.msra.mxu0 0.0
    %339 = vmatprep.subr.mxu0 0.0
    %340 = vmatpush1.msra.mxu0 0.0
    %341 = vmatprep.mubr.f32.mxu0 0.0
    %342 = vmatmul.mubr.f32.gmra.mrb[0].mxu0 %v238
    %v343 = vpop.f32.mrb[0].mxu0
    %v344 = vadd.f32 %v275, %v343
    %v345 = vpop.f32.mrb[0].mxu0
    %346 = vmatprep.mubr.f32.mxu0 0.0
    %347 = vmatmul.mubr.f32.gmra.mrb[0].mxu0 %v239
    %v348 = vpop.f32.mrb[0].mxu0
    %v349 = vadd.f32 %v275, %v348
    %v350 = vpop.f32.mrb[0].mxu0
    %351 = vmatprep.mubr.f32.mxu0 0.0
    %352 = vmatmul.mubr.f32.gmra.mrb[0].mxu0 %v240
    %v353 = vpop.f32.mrb[0].mxu0
    %v354 = vadd.f32 %v275, %v353
    %v355 = vpop.f32.mrb[0].mxu0
    %356 = vmatprep.mubr.f32.mxu0 0.0
    %357 = vmatmul.mubr.f32.gmra.mrb[0].mxu0 %v241
    %v358 = vpop.f32.mrb[0].mxu0
    %v359 = vadd.f32 %v275, %v358
    %v360 = vpop.f32.mrb[0].mxu0
    %361 = vmatprep.mubr.f32.mxu0 0.0
    %362 = vmatmul.mubr.f32.gmra.mrb[0].mxu0 %v242
    %v363 = vpop.f32.mrb[0].mxu0
    %v364 = vadd.f32 %v275, %v363
    %v365 = vpop.f32.mrb[0].mxu0
    %366 = vmatprep.mubr.f32.mxu0 0.0
    %367 = vmatmul.mubr.f32.gmra.mrb[0].mxu0 %v243
    %v368 = vpop.f32.mrb[0].mxu0
    %v369 = vadd.f32 %v275, %v368
    %v370 = vpop.f32.mrb[0].mxu0
    %371 = vmatprep.mubr.f32.mxu0 0.0
    %372 = vmatmul.mubr.f32.gmra.mrb[0].mxu0 %v244
    %v373 = vpop.f32.mrb[0].mxu0
    %v374 = vadd.f32 %v275, %v373
    %v375 = vpop.f32.mrb[0].mxu0
    %376 = vmatprep.mubr.f32.mxu0 0.0
    %377 = vmatmul.mubr.f32.gmra.mrb[0].mxu0 %v245
    %v378 = vpop.f32.mrb[0].mxu0
    %v379 = vadd.f32 %v275, %v378
    %v380 = vpop.f32.mrb[0].mxu0
    %381 = vmatprep.mubr.f32.mxu0 0.0
    %382 = vmatmul.mubr.f32.gmra.mrb[0].mxu0 %v246
    %v383 = vpop.f32.mrb[0].mxu0
    %v384 = vadd.f32 %v275, %v383
    %v385 = vpop.f32.mrb[0].mxu0
    %386 = vmatprep.mubr.f32.mxu0 0.0
    %387 = vmatmul.mubr.f32.gmra.mrb[0].mxu0 %v247
    %v388 = vpop.f32.mrb[0].mxu0
    %v389 = vadd.f32 %v275, %v388
    %v390 = vpop.f32.mrb[0].mxu0
    %391 = vmatprep.mubr.f32.mxu0 0.0
    %392 = vmatmul.mubr.f32.gmra.mrb[0].mxu0 %v248
    %v393 = vpop.f32.mrb[0].mxu0
    %v394 = vadd.f32 %v275, %v393
    %v395 = vpop.f32.mrb[0].mxu0
    %396 = vmatprep.mubr.f32.mxu0 0.0
    %397 = vmatmul.mubr.f32.gmra.mrb[0].mxu0 %v249
    %v398 = vpop.f32.mrb[0].mxu0
    %v399 = vadd.f32 %v275, %v398
    %v400 = vpop.f32.mrb[0].mxu0
    %401 = vmatprep.mubr.f32.mxu0 0.0
    %402 = vmatmul.mubr.f32.gmra.mrb[0].mxu0 %v250
    %v403 = vpop.f32.mrb[0].mxu0
    %v404 = vadd.f32 %v275, %v403
    %v405 = vpop.f32.mrb[0].mxu0
    %406 = vmatprep.mubr.f32.mxu0 0.0
    %407 = vmatmul.mubr.f32.gmra.mrb[0].mxu0 %v251
    %v408 = vpop.f32.mrb[0].mxu0
    %v409 = vadd.f32 %v275, %v408
    %v410 = vpop.f32.mrb[0].mxu0
    %411 = vmatprep.mubr.f32.mxu0 0.0
    %412 = vmatmul.mubr.f32.gmra.mrb[0].mxu0 %v252
    %v413 = vpop.f32.mrb[0].mxu0
    %v414 = vadd.f32 %v275, %v413
    %v415 = vpop.f32.mrb[0].mxu0
    %416 = vmatprep.mubr.f32.mxu0 0.0
    %417 = vmatmul.mubr.f32.gmra.mrb[0].mxu0 %v253
    %v418 = vpop.f32.mrb[0].mxu0
    %v419 = vadd.f32 %v275, %v418
    %v420 = vpop.f32.mrb[0].mxu0
    %421 = vdwg.mxu0
    %v422 = vmax.f32 %v344, 0.0
    %v423 = vmax.f32 %v349, 0.0
    %v424 = vmax.f32 %v354, 0.0
    %v425 = vmax.f32 %v359, 0.0
    %v426 = vmax.f32 %v364, 0.0
    %v427 = vmax.f32 %v369, 0.0
    %v428 = vmax.f32 %v374, 0.0
    %v429 = vmax.f32 %v379, 0.0
    %v430 = vmax.f32 %v384, 0.0
    %v431 = vmax.f32 %v389, 0.0
    %v432 = vmax.f32 %v394, 0.0
    %v433 = vmax.f32 %v399, 0.0
    %v434 = vmax.f32 %v404, 0.0
    %v435 = vmax.f32 %v409, 0.0
    %v436 = vmax.f32 %v414, 0.0
    %v437 = vmax.f32 %v419, 0.0
    %v438 = vld [vmem:[#allocation4] sm:$0xff]
    %v439 = vld [vmem:[#allocation4 + $0x8] sm:$0xff]
    %v440 = vld [vmem:[#allocation4 + $0x10] sm:$0xff]
    %v441 = vld [vmem:[#allocation4 + $0x18] sm:$0xff]
    %v442 = vld [vmem:[#allocation4 + $0x20] sm:$0xff]
    %v443 = vld [vmem:[#allocation4 + $0x28] sm:$0xff]
    %v444 = vld [vmem:[#allocation4 + $0x30] sm:$0xff]
    %v445 = vld [vmem:[#allocation4 + $0x38] sm:$0xff]
    %v446 = vld [vmem:[#allocation4 + $0x40] sm:$0xff]
    %v447 = vld [vmem:[#allocation4 + $0x48] sm:$0xff]
    %v448 = vld [vmem:[#allocation4 + $0x50] sm:$0xff]
    %v449 = vld [vmem:[#allocation4 + $0x58] sm:$0xff]
    %v450 = vld [vmem:[#allocation4 + $0x60] sm:$0xff]
    %v451 = vld [vmem:[#allocation4 + $0x68] sm:$0xff]
    %v452 = vld [vmem:[#allocation4 + $0x70] sm:$0xff]
    %v453 = vld [vmem:[#allocation4 + $0x78] sm:$0xff]
    %v454 = vld [vmem:[%s6] sm:$0x1]
    %v456 = vlaneseq
    %v457 = vshrl.u32 %v456, 7
    %v458 = vsub.s32 0, %v457
    %v459 = vrot.slane %v454, %v458
    %461 = vmatprep.subr.mxu0 0.0
    %462 = vmatpush1.msra.mxu0 %v438
    %463 = vmatprep.subr.mxu0 0.0
    %464 = vmatpush1.msra.mxu0 %v439
    %465 = vmatprep.subr.mxu0 0.0
    %466 = vmatpush1.msra.mxu0 %v440
    %467 = vmatprep.subr.mxu0 0.0
    %468 = vmatpush1.msra.mxu0 %v441
    %469 = vmatprep.subr.mxu0 0.0
    %470 = vmatpush1.msra.mxu0 %v442
    %471 = vmatprep.subr.mxu0 0.0
    %472 = vmatpush1.msra.mxu0 %v443
    %473 = vmatprep.subr.mxu0 0.0
    %474 = vmatpush1.msra.mxu0 %v444
    %475 = vmatprep.subr.mxu0 0.0
    %476 = vmatpush1.msra.mxu0 %v445
    %477 = vmatprep.subr.mxu0 0.0
    %478 = vmatpush1.msra.mxu0 %v446
    %479 = vmatprep.subr.mxu0 0.0
    %480 = vmatpush1.msra.mxu0 %v447
    %481 = vmatprep.subr.mxu0 0.0
    %482 = vmatpush1.msra.mxu0 %v448
    %483 = vmatprep.subr.mxu0 0.0
    %484 = vmatpush1.msra.mxu0 %v449
    %485 = vmatprep.subr.mxu0 0.0
    %486 = vmatpush1.msra.mxu0 %v450
    %487 = vmatprep.subr.mxu0 0.0
    %488 = vmatpush1.msra.mxu0 %v451
    %489 = vmatprep.subr.mxu0 0.0
    %490 = vmatpush1.msra.mxu0 %v452
    %491 = vmatprep.subr.mxu0 0.0
    %492 = vmatpush1.msra.mxu0 %v453
    %493 = vmatprep.subr.mxu0 0.0
    %494 = vmatpush1.msra.mxu0 0.0
    %495 = vmatprep.subr.mxu0 0.0
    %496 = vmatpush1.msra.mxu0 0.0
    %497 = vmatprep.subr.mxu0 0.0
    %498 = vmatpush1.msra.mxu0 0.0
    %499 = vmatprep.subr.mxu0 0.0
    %500 = vmatpush1.msra.mxu0 0.0
    %501 = vmatprep.subr.mxu0 0.0
    %502 = vmatpush1.msra.mxu0 0.0
    %503 = vmatprep.subr.mxu0 0.0
    %504 = vmatpush1.msra.mxu0 0.0
    %505 = vmatprep.subr.mxu0 0.0
    %506 = vmatpush1.msra.mxu0 0.0
    %507 = vmatprep.subr.mxu0 0.0
    %508 = vmatpush1.msra.mxu0 0.0
    %509 = vmatprep.subr.mxu0 0.0
    %510 = vmatpush1.msra.mxu0 0.0
    %511 = vmatprep.subr.mxu0 0.0
    %512 = vmatpush1.msra.mxu0 0.0
    %513 = vmatprep.subr.mxu0 0.0
    %514 = vmatpush1.msra.mxu0 0.0
    %515 = vmatprep.subr.mxu0 0.0
    %516 = vmatpush1.msra.mxu0 0.0
    %517 = vmatprep.subr.mxu0 0.0
    %518 = vmatpush1.msra.mxu0 0.0
    %519 = vmatprep.subr.mxu0 0.0
    %520 = vmatpush1.msra.mxu0 0.0
    %521 = vmatprep.subr.mxu0 0.0
    %522 = vmatpush1.msra.mxu0 0.0
    %523 = vmatprep.subr.mxu0 0.0
    %524 = vmatpush1.msra.mxu0 0.0
    %525 = vmatprep.mubr.f32.mxu0 0.0
    %526 = vmatmul.mubr.f32.gmra.mrb[0].mxu0 %v422
    %v527 = vpop.f32.mrb[0].mxu0
    %v528 = vadd.f32 %v459, %v527
    %v529 = vpop.f32.mrb[0].mxu0
    %530 = vmatprep.mubr.f32.mxu0 0.0
    %531 = vmatmul.mubr.f32.gmra.mrb[0].mxu0 %v423
    %v532 = vpop.f32.mrb[0].mxu0
    %v533 = vadd.f32 %v459, %v532
    %v534 = vpop.f32.mrb[0].mxu0
    %535 = vmatprep.mubr.f32.mxu0 0.0
    %536 = vmatmul.mubr.f32.gmra.mrb[0].mxu0 %v424
    %v537 = vpop.f32.mrb[0].mxu0
    %v538 = vadd.f32 %v459, %v537
    %v539 = vpop.f32.mrb[0].mxu0
    %540 = vmatprep.mubr.f32.mxu0 0.0
    %541 = vmatmul.mubr.f32.gmra.mrb[0].mxu0 %v425
    %v542 = vpop.f32.mrb[0].mxu0
    %v543 = vadd.f32 %v459, %v542
    %v544 = vpop.f32.mrb[0].mxu0
    %545 = vmatprep.mubr.f32.mxu0 0.0
    %546 = vmatmul.mubr.f32.gmra.mrb[0].mxu0 %v426
    %v547 = vpop.f32.mrb[0].mxu0
    %v548 = vadd.f32 %v459, %v547
    %v549 = vpop.f32.mrb[0].mxu0
    %550 = vmatprep.mubr.f32.mxu0 0.0
    %551 = vmatmul.mubr.f32.gmra.mrb[0].mxu0 %v427
    %v552 = vpop.f32.mrb[0].mxu0
    %v553 = vadd.f32 %v459, %v552
    %v554 = vpop.f32.mrb[0].mxu0
    %555 = vmatprep.mubr.f32.mxu0 0.0
    %556 = vmatmul.mubr.f32.gmra.mrb[0].mxu0 %v428
    %v557 = vpop.f32.mrb[0].mxu0
    %v558 = vadd.f32 %v459, %v557
    %v559 = vpop.f32.mrb[0].mxu0
    %560 = vmatprep.mubr.f32.mxu0 0.0
    %561 = vmatmul.mubr.f32.gmra.mrb[0].mxu0 %v429
    %v562 = vpop.f32.mrb[0].mxu0
    %v563 = vadd.f32 %v459, %v562
    %v564 = vpop.f32.mrb[0].mxu0
    %565 = vmatprep.mubr.f32.mxu0 0.0
    %566 = vmatmul.mubr.f32.gmra.mrb[0].mxu0 %v430
    %v567 = vpop.f32.mrb[0].mxu0
    %v568 = vadd.f32 %v459, %v567
    %v569 = vpop.f32.mrb[0].mxu0
    %570 = vmatprep.mubr.f32.mxu0 0.0
    %571 = vmatmul.mubr.f32.gmra.mrb[0].mxu0 %v431
    %v572 = vpop.f32.mrb[0].mxu0
    %v573 = vadd.f32 %v459, %v572
    %v574 = vpop.f32.mrb[0].mxu0
    %575 = vmatprep.mubr.f32.mxu0 0.0
    %576 = vmatmul.mubr.f32.gmra.mrb[0].mxu0 %v432
    %v577 = vpop.f32.mrb[0].mxu0
    %v578 = vadd.f32 %v459, %v577
    %v579 = vpop.f32.mrb[0].mxu0
    %580 = vmatprep.mubr.f32.mxu0 0.0
    %581 = vmatmul.mubr.f32.gmra.mrb[0].mxu0 %v433
    %v582 = vpop.f32.mrb[0].mxu0
    %v583 = vadd.f32 %v459, %v582
    %v584 = vpop.f32.mrb[0].mxu0
    %585 = vmatprep.mubr.f32.mxu0 0.0
    %586 = vmatmul.mubr.f32.gmra.mrb[0].mxu0 %v434
    %v587 = vpop.f32.mrb[0].mxu0
    %v588 = vadd.f32 %v459, %v587
    %v589 = vpop.f32.mrb[0].mxu0
    %590 = vmatprep.mubr.f32.mxu0 0.0
    %591 = vmatmul.mubr.f32.gmra.mrb[0].mxu0 %v435
    %v592 = vpop.f32.mrb[0].mxu0
    %v593 = vadd.f32 %v459, %v592
    %v594 = vpop.f32.mrb[0].mxu0
    %595 = vmatprep.mubr.f32.mxu0 0.0
    %596 = vmatmul.mubr.f32.gmra.mrb[0].mxu0 %v436
    %v597 = vpop.f32.mrb[0].mxu0
    %v598 = vadd.f32 %v459, %v597
    %v599 = vpop.f32.mrb[0].mxu0
    %600 = vmatprep.mubr.f32.mxu0 0.0
    %601 = vmatmul.mubr.f32.gmra.mrb[0].mxu0 %v437
    %v602 = vpop.f32.mrb[0].mxu0
    %v603 = vadd.f32 %v459, %v602
    %v604 = vpop.f32.mrb[0].mxu0
    %605 = vdwg.mxu0
    %v606 = vmax.f32 %v528, 0.0
    %v607 = vmax.f32 %v533, 0.0
    %v608 = vmax.f32 %v538, 0.0
    %v609 = vmax.f32 %v543, 0.0
    %v610 = vmax.f32 %v548, 0.0
    %v611 = vmax.f32 %v553, 0.0
    %v612 = vmax.f32 %v558, 0.0
    %v613 = vmax.f32 %v563, 0.0
    %v614 = vmax.f32 %v568, 0.0
    %v615 = vmax.f32 %v573, 0.0
    %v616 = vmax.f32 %v578, 0.0
    %v617 = vmax.f32 %v583, 0.0
    %v618 = vmax.f32 %v588, 0.0
    %v619 = vmax.f32 %v593, 0.0
    %v620 = vmax.f32 %v598, 0.0
    %v621 = vmax.f32 %v603, 0.0
    %622 = vst [vmem:[%s7] sm:$0xff] %v606
    %623 = vst [vmem:[%s7 + $0x8] sm:$0xff] %v607
    %624 = vst [vmem:[%s7 + $0x10] sm:$0xff] %v608
    %625 = vst [vmem:[%s7 + $0x18] sm:$0xff] %v609
    %626 = vst [vmem:[%s7 + $0x20] sm:$0xff] %v610
    %627 = vst [vmem:[%s7 + $0x28] sm:$0xff] %v611
    %628 = vst [vmem:[%s7 + $0x30] sm:$0xff] %v612
    %629 = vst [vmem:[%s7 + $0x38] sm:$0xff] %v613
    %630 = vst [vmem:[%s7 + $0x40] sm:$0xff] %v614
    %631 = vst [vmem:[%s7 + $0x48] sm:$0xff] %v615
    %632 = vst [vmem:[%s7 + $0x50] sm:$0xff] %v616
    %633 = vst [vmem:[%s7 + $0x58] sm:$0xff] %v617
    %634 = vst [vmem:[%s7 + $0x60] sm:$0xff] %v618
    %635 = vst [vmem:[%s7 + $0x68] sm:$0xff] %v619
    %636 = vst [vmem:[%s7 + $0x70] sm:$0xff] %v620
    %637 = vst [vmem:[%s7 + $0x78] sm:$0xff] %v621
    // Predicated region
    $region38: #{fused_mlp_forward.1} parent=1 // pred_check
      _
    $region39: #{fused_mlp_forward.1} parent=1 // pred_check_branch
      %639 = sbr.rel (0) target = $region41
    $region40: #{fused_mlp_forward.1} parent=1 // pred_region
      _
    $region41: #{fused_mlp_forward.1} parent=1 // pred_fallthru
      _
    // Predicated region
    $region42: #{fused_mlp_forward.1} parent=1 // pred_check
      _
    $region43: #{fused_mlp_forward.1} parent=1 // pred_check_branch
      %641 = sbr.rel (0) target = $region45
    $region44: #{fused_mlp_forward.1} parent=1 // pred_region
      _
    $region45: #{fused_mlp_forward.1} parent=1 // pred_fallthru
      _
    %642 = vsyncpa [#allocation3], 1
    %643 = vsyncpa [#allocation5], 1

</llo_original>
